<compile_context>
chip_gen: v5e
topology: v5e:2x2
jax: 0.10.0
libtpu: 0.0.40
codegen_flags: <defaults>
</compile_context>

<pallas_src>
import functools
import math

import jax
import jax.numpy as jnp
from jax import lax
from jax.experimental import pallas as pl
from jax.experimental.pallas import tpu as pltpu


# ----------------------------------------------------------------------------
# Fused kernel: every per-token linear runs on the flat (T, H) token axis;
# attention is a batched dot_general over the collapsed (B * num_heads) axis.
# ----------------------------------------------------------------------------
def code_expert_kernel(B, S, num_heads, head_dim, compute_dtype,
                       x_ref,
                       w_syn_ref, b_syn_ref,
                       w_qkv_ref, b_qkv_ref,
                       w_o_ref, b_o_ref,
                       g1_ref, beta1_ref,
                       w_f1_ref, b_f1_ref, w_f2_ref, b_f2_ref,
                       g2_ref, beta2_ref,
                       w_gen_ref, b_gen_ref,
                       out_ref):
    eps = 1e-5
    H = num_heads * head_dim
    T = B * S

    def layer_norm(h, gamma, beta):
        mean = jnp.mean(h, axis=-1, keepdims=True)
        cent = h - mean
        var = jnp.mean(cent * cent, axis=-1, keepdims=True)
        return cent * lax.rsqrt(var + eps) * gamma + beta

    def matmul(a, w_ref, b_ref):
        # bf16 operands, f32 accumulate + f32 bias add.
        return (jnp.dot(a.astype(compute_dtype), w_ref[...].astype(compute_dtype),
                        preferred_element_type=jnp.float32) + b_ref[...])

    x = x_ref[...]                                                    # (T, H) f32

    # syntax = syntax_analyzer(x)
    syntax = matmul(x, w_syn_ref, b_syn_ref)                          # (T, H)

    # Fused Q/K/V projection (softmax scale pre-folded into the Q block).
    qkv = matmul(syntax, w_qkv_ref, b_qkv_ref)                        # (T, 3H)
    q = qkv[:, 0:H]
    k = qkv[:, H:2 * H]
    v = qkv[:, 2 * H:3 * H]

    # Split heads.  num_heads == 1: pure reshape, no transpose.
    if num_heads == 1:
        qh = q.reshape(B, S, head_dim)
        kh = k.reshape(B, S, head_dim)
        vh = v.reshape(B, S, head_dim)
    else:
        def split_heads(t):
            return (t.reshape(B, S, num_heads, head_dim)
                     .transpose(0, 2, 1, 3)
                     .reshape(B * num_heads, S, head_dim))
        qh, kh, vh = split_heads(q), split_heads(k), split_heads(v)

    # Batched NT contraction (q @ k^T) over the collapsed batch axis — no explicit
    # transpose of K in the hot path.
    scores = jnp.einsum("bqd,bkd->bqk",
                        qh.astype(compute_dtype), kh.astype(compute_dtype),
                        preferred_element_type=jnp.float32)           # (Bh, S, S)
    m = jnp.max(scores, axis=-1, keepdims=True)
    p = jnp.exp(scores - m)
    denom = jnp.sum(p, axis=-1, keepdims=True)
    p = p * pl.reciprocal(denom, approx=True)
    attn = jnp.einsum("bqk,bkd->bqd",
                      p.astype(compute_dtype), vh.astype(compute_dtype),
                      preferred_element_type=jnp.float32)             # (Bh, S, hd)

    if num_heads == 1:
        attn = attn.reshape(T, H)
    else:
        attn = (attn.reshape(B, num_heads, S, head_dim)
                    .transpose(0, 2, 1, 3)
                    .reshape(T, H))

    # out_proj of MultiheadAttention — fed straight from vregs (no scratch round trip).
    attn_out = matmul(attn, w_o_ref, b_o_ref)                         # (T, H)

    # Post-norm TransformerEncoderLayer (norm_first=False, dropout = identity).
    h1 = layer_norm(syntax + attn_out, g1_ref[...], beta1_ref[...])   # (T, H)

    ff = jnp.maximum(matmul(h1, w_f1_ref, b_f1_ref), 0.0)             # (T, 2H)
    ff = matmul(ff, w_f2_ref, b_f2_ref)                               # (T, H)

    h2 = layer_norm(h1 + ff, g2_ref[...], beta2_ref[...])             # (T, H)

    # code_output = code_generator(h2)
    out = matmul(h2, w_gen_ref, b_gen_ref)                            # (T, H)
    out_ref[...] = out.astype(out_ref.dtype)


# ----------------------------------------------------------------------------
# Wrapper: param glue (transpose to (in, out), fuse QKV, fold softmax scale,
# pre-cast matmul weights to the compute dtype) + one grid-free pallas_call.
# ----------------------------------------------------------------------------
def code_expert_forward(x, p, num_heads, compute_dtype=jnp.bfloat16):
    B, S, H = x.shape
    T = B * S
    head_dim = H // num_heads
    cd = compute_dtype

    wq, wk, wv = (p["in_proj_w"][i * H:(i + 1) * H] for i in range(3))
    bq, bk, bv = (p["in_proj_b"][i * H:(i + 1) * H] for i in range(3))

    # Fuse Q/K/V into one (H, 3H) weight; fold 1/sqrt(head_dim) into the Q block.
    scale = 1.0 / math.sqrt(head_dim)
    w_qkv = jnp.concatenate([wq.T * scale, wk.T, wv.T], axis=1)        # (H, 3H)
    b_qkv = jnp.concatenate([bq * scale, bk, bv]).reshape(1, 3 * H)    # (1, 3H), f32

    args = (
        x.reshape(T, H),
        p["w_syn"].T.astype(cd), p["b_syn"].reshape(1, H),
        w_qkv.astype(cd), b_qkv,
        p["w_o"].T.astype(cd), p["b_o"].reshape(1, H),
        p["g1"].reshape(1, H), p["beta1"].reshape(1, H),
        p["w_f1"].T.astype(cd), p["b_f1"].reshape(1, 2 * H),
        p["w_f2"].T.astype(cd), p["b_f2"].reshape(1, H),
        p["g2"].reshape(1, H), p["beta2"].reshape(1, H),
        p["w_gen"].T.astype(cd), p["b_gen"].reshape(1, H),
    )

    out2d = pl.pallas_call(
        functools.partial(code_expert_kernel, B, S, num_heads, head_dim, cd),
        out_shape=jax.ShapeDtypeStruct((T, H), jnp.float32),
    )(*args)
    return out2d.reshape(B, S, H)


# ----------------------------------------------------------------------------
# Pure-JAX f32 reference (PyTorch conventions) for a sanity check.
# ----------------------------------------------------------------------------
def _layer_norm_ref(h, gamma, beta, eps=1e-5):
    mean = jnp.mean(h, axis=-1, keepdims=True)
    var = jnp.mean((h - mean) ** 2, axis=-1, keepdims=True)
    return (h - mean) / jnp.sqrt(var + eps) * gamma + beta


def code_expert_reference(x, p, num_heads):
    B, S, H = x.shape
    hd = H // num_heads
    syntax = x @ p["w_syn"].T + p["b_syn"]
    wq, wk, wv = (p["in_proj_w"][i * H:(i + 1) * H] for i in range(3))
    bq, bk, bv = (p["in_proj_b"][i * H:(i + 1) * H] for i in range(3))
    q = syntax @ wq.T + bq
    k = syntax @ wk.T + bk
    v = syntax @ wv.T + bv
    qh = q.reshape(B, S, num_heads, hd).transpose(0, 2, 1, 3)
    kh = k.reshape(B, S, num_heads, hd).transpose(0, 2, 1, 3)
    vh = v.reshape(B, S, num_heads, hd).transpose(0, 2, 1, 3)
    scores = jnp.einsum("bhqd,bhkd->bhqk", qh, kh) / jnp.sqrt(jnp.float32(hd))
    pa = jax.nn.softmax(scores, axis=-1)
    attn = jnp.einsum("bhqk,bhkd->bhqd", pa, vh)
    attn = attn.transpose(0, 2, 1, 3).reshape(B, S, H)
    attn_out = attn @ p["w_o"].T + p["b_o"]
    h1 = _layer_norm_ref(syntax + attn_out, p["g1"], p["beta1"])
    ff = jax.nn.relu(h1 @ p["w_f1"].T + p["b_f1"]) @ p["w_f2"].T + p["b_f2"]
    h2 = _layer_norm_ref(h1 + ff, p["g2"], p["beta2"])
    return h2 @ p["w_gen"].T + p["b_gen"]


def init_params(key, hidden_size):
    H = hidden_size
    ks = jax.random.split(key, 16)
    n = lambda k, shape, s=0.05: s * jax.random.normal(k, shape, dtype=jnp.float32)
    return {
        "w_syn": n(ks[0], (H, H)), "b_syn": n(ks[1], (H,)),
        "in_proj_w": n(ks[2], (3 * H, H)), "in_proj_b": n(ks[3], (3 * H,)),
        "w_o": n(ks[4], (H, H)), "b_o": n(ks[5], (H,)),
        "g1": 1.0 + n(ks[6], (H,)), "beta1": n(ks[7], (H,)),
        "w_f1": n(ks[8], (2 * H, H)), "b_f1": n(ks[9], (2 * H,)),
        "w_f2": n(ks[10], (H, 2 * H)), "b_f2": n(ks[11], (H,)),
        "g2": 1.0 + n(ks[12], (H,)), "beta2": n(ks[13], (H,)),
        "w_gen": n(ks[14], (H, H)), "b_gen": n(ks[15], (H,)),
    }


if __name__ == "__main__":
    B, S, H = 2, 8, 32
    # PyTorch head-count logic: min(16, max(1, H // 64)), decrement until divisible.
    num_heads = min(16, max(1, H // 64))
    while H % num_heads != 0:
        num_heads -= 1

    key = jax.random.PRNGKey(0)
    pkey, xkey = jax.random.split(key)
    params = init_params(pkey, H)
    x = jax.random.normal(xkey, (B, S, H), dtype=jnp.float32)

    out = code_expert_forward(x, params, num_heads)
    out = jax.block_until_ready(out)

    ref = code_expert_reference(x, params, num_heads)
    assert out.shape == (B, S, H)
    assert jnp.allclose(out, ref, atol=2e-2, rtol=2e-2), (
        f"max abs diff {jnp.max(jnp.abs(out - ref))}")

    print("KERNEL_OK")
</pallas_src>

<mosaic_0001>
module attributes {stable_mosaic.version = 11 : i64} {
  func.func @code_expert_kernel(%arg0: memref<16x32xf32, #tpu.memory_space<vmem>>, %arg1: memref<32x32xbf16, #tpu.memory_space<vmem>>, %arg2: memref<1x32xf32, #tpu.memory_space<vmem>>, %arg3: memref<32x96xbf16, #tpu.memory_space<vmem>>, %arg4: memref<1x96xf32, #tpu.memory_space<vmem>>, %arg5: memref<32x32xbf16, #tpu.memory_space<vmem>>, %arg6: memref<1x32xf32, #tpu.memory_space<vmem>>, %arg7: memref<1x32xf32, #tpu.memory_space<vmem>>, %arg8: memref<1x32xf32, #tpu.memory_space<vmem>>, %arg9: memref<32x64xbf16, #tpu.memory_space<vmem>>, %arg10: memref<1x64xf32, #tpu.memory_space<vmem>>, %arg11: memref<64x32xbf16, #tpu.memory_space<vmem>>, %arg12: memref<1x32xf32, #tpu.memory_space<vmem>>, %arg13: memref<1x32xf32, #tpu.memory_space<vmem>>, %arg14: memref<1x32xf32, #tpu.memory_space<vmem>>, %arg15: memref<32x32xbf16, #tpu.memory_space<vmem>>, %arg16: memref<1x32xf32, #tpu.memory_space<vmem>>, %arg17: memref<16x32xf32, #tpu.memory_space<vmem>>) attributes {dimension_semantics = [], scalar_prefetch = 0 : i64, scratch_operands = 0 : i64, tpu.core_type = #tpu.core_type<tc>} {
    %c0 = arith.constant 0 : index
    %c0_0 = arith.constant 0 : index
    %0 = vector.load %arg0[%c0, %c0_0] : memref<16x32xf32, #tpu.memory_space<vmem>>, vector<16x32xf32>
    %1 = arith.truncf %0 : vector<16x32xf32> to vector<16x32xbf16>
    %c0_1 = arith.constant 0 : index
    %c0_2 = arith.constant 0 : index
    %2 = vector.load %arg1[%c0_1, %c0_2] : memref<32x32xbf16, #tpu.memory_space<vmem>>, vector<32x32xbf16>
    %cst = arith.constant dense<0.000000e+00> : vector<16x32xf32>
    %3 = tpu.matmul %1, %2, %cst {dimension_numbers = #tpu.dot_dimension_numbers<[1], [0], [0], [1], [0, 0, 1, 1], [], []>} : vector<16x32xbf16>, vector<32x32xbf16>, vector<16x32xf32> -> vector<16x32xf32>
    %c0_3 = arith.constant 0 : index
    %c0_4 = arith.constant 0 : index
    %4 = vector.load %arg2[%c0_3, %c0_4] : memref<1x32xf32, #tpu.memory_space<vmem>>, vector<1x32xf32>
    %5 = vector.broadcast %4 : vector<1x32xf32> to vector<16x32xf32>
    %6 = arith.addf %3, %5 : vector<16x32xf32>
    %7 = arith.truncf %6 : vector<16x32xf32> to vector<16x32xbf16>
    %c0_5 = arith.constant 0 : index
    %c0_6 = arith.constant 0 : index
    %8 = vector.load %arg3[%c0_5, %c0_6] : memref<32x96xbf16, #tpu.memory_space<vmem>>, vector<32x96xbf16>
    %cst_7 = arith.constant dense<0.000000e+00> : vector<16x96xf32>
    %9 = tpu.matmul %7, %8, %cst_7 {dimension_numbers = #tpu.dot_dimension_numbers<[1], [0], [0], [1], [0, 0, 1, 1], [], []>} : vector<16x32xbf16>, vector<32x96xbf16>, vector<16x96xf32> -> vector<16x96xf32>
    %c0_8 = arith.constant 0 : index
    %c0_9 = arith.constant 0 : index
    %10 = vector.load %arg4[%c0_8, %c0_9] : memref<1x96xf32, #tpu.memory_space<vmem>>, vector<1x96xf32>
    %11 = vector.broadcast %10 : vector<1x96xf32> to vector<16x96xf32>
    %12 = arith.addf %9, %11 : vector<16x96xf32>
    %13 = vector.extract_strided_slice %12 {offsets = [0, 0], sizes = [16, 32], strides = [1, 1]} : vector<16x96xf32> to vector<16x32xf32>
    %14 = vector.extract_strided_slice %12 {offsets = [0, 32], sizes = [16, 32], strides = [1, 1]} : vector<16x96xf32> to vector<16x32xf32>
    %15 = vector.extract_strided_slice %12 {offsets = [0, 64], sizes = [16, 32], strides = [1, 1]} : vector<16x96xf32> to vector<16x32xf32>
    %16 = vector.shape_cast %13 : vector<16x32xf32> to vector<2x8x32xf32>
    %17 = vector.shape_cast %14 : vector<16x32xf32> to vector<2x8x32xf32>
    %18 = vector.shape_cast %15 : vector<16x32xf32> to vector<2x8x32xf32>
    %19 = arith.truncf %16 : vector<2x8x32xf32> to vector<2x8x32xbf16>
    %20 = arith.truncf %17 : vector<2x8x32xf32> to vector<2x8x32xbf16>
    "tpu.trace_start"() <{level = 10 : i32, message = "bqd,bkd->bqk"}> : () -> ()
    %cst_10 = arith.constant dense<0.000000e+00> : vector<2x8x8xf32>
    %21 = tpu.matmul %19, %20, %cst_10 {dimension_numbers = #tpu.dot_dimension_numbers<[2], [2], [1], [1], [0, 0, 0, 1, 1, 1], [0], [0]>} : vector<2x8x32xbf16>, vector<2x8x32xbf16>, vector<2x8x8xf32> -> vector<2x8x8xf32>
    "tpu.trace_stop"() : () -> ()
    %cst_11 = arith.constant dense<0xFF800000> : vector<2x8xf32>
    %22 = vector.multi_reduction <maximumf>, %21, %cst_11 [2] : vector<2x8x8xf32> to vector<2x8xf32>
    %23 = vector.shape_cast %22 : vector<2x8xf32> to vector<2x8x1xf32>
    %24 = vector.broadcast %23 : vector<2x8x1xf32> to vector<2x8x8xf32>
    %25 = arith.subf %21, %24 : vector<2x8x8xf32>
    %26 = math.exp %25 : vector<2x8x8xf32>
    %cst_12 = arith.constant dense<0.000000e+00> : vector<2x8xf32>
    %27 = vector.multi_reduction <add>, %26, %cst_12 [2] : vector<2x8x8xf32> to vector<2x8xf32>
    %28 = vector.shape_cast %27 : vector<2x8xf32> to vector<2x8x1xf32>
    %29 = tpu.reciprocal %28 {approx = true} : vector<2x8x1xf32> -> vector<2x8x1xf32>
    %30 = vector.broadcast %29 : vector<2x8x1xf32> to vector<2x8x8xf32>
    %31 = arith.mulf %26, %30 : vector<2x8x8xf32>
    %32 = arith.truncf %31 : vector<2x8x8xf32> to vector<2x8x8xbf16>
    %33 = arith.truncf %18 : vector<2x8x32xf32> to vector<2x8x32xbf16>
    "tpu.trace_start"() <{level = 10 : i32, message = "bqk,bkd->bqd"}> : () -> ()
    %cst_13 = arith.constant dense<0.000000e+00> : vector<2x8x32xf32>
    %34 = tpu.matmul %32, %33, %cst_13 {dimension_numbers = #tpu.dot_dimension_numbers<[2], [1], [1], [2], [0, 0, 0, 1, 1, 2], [0], [0]>} : vector<2x8x8xbf16>, vector<2x8x32xbf16>, vector<2x8x32xf32> -> vector<2x8x32xf32>
    "tpu.trace_stop"() : () -> ()
    %35 = vector.shape_cast %34 : vector<2x8x32xf32> to vector<16x32xf32>
    %36 = arith.truncf %35 : vector<16x32xf32> to vector<16x32xbf16>
    %c0_14 = arith.constant 0 : index
    %c0_15 = arith.constant 0 : index
    %37 = vector.load %arg5[%c0_14, %c0_15] : memref<32x32xbf16, #tpu.memory_space<vmem>>, vector<32x32xbf16>
    %cst_16 = arith.constant dense<0.000000e+00> : vector<16x32xf32>
    %38 = tpu.matmul %36, %37, %cst_16 {dimension_numbers = #tpu.dot_dimension_numbers<[1], [0], [0], [1], [0, 0, 1, 1], [], []>} : vector<16x32xbf16>, vector<32x32xbf16>, vector<16x32xf32> -> vector<16x32xf32>
    %c0_17 = arith.constant 0 : index
    %c0_18 = arith.constant 0 : index
    %39 = vector.load %arg6[%c0_17, %c0_18] : memref<1x32xf32, #tpu.memory_space<vmem>>, vector<1x32xf32>
    %40 = vector.broadcast %39 : vector<1x32xf32> to vector<16x32xf32>
    %41 = arith.addf %38, %40 : vector<16x32xf32>
    %42 = arith.addf %6, %41 : vector<16x32xf32>
    %c0_19 = arith.constant 0 : index
    %c0_20 = arith.constant 0 : index
    %43 = vector.load %arg7[%c0_19, %c0_20] : memref<1x32xf32, #tpu.memory_space<vmem>>, vector<1x32xf32>
    %c0_21 = arith.constant 0 : index
    %c0_22 = arith.constant 0 : index
    %44 = vector.load %arg8[%c0_21, %c0_22] : memref<1x32xf32, #tpu.memory_space<vmem>>, vector<1x32xf32>
    %cst_23 = arith.constant dense<0.000000e+00> : vector<16xf32>
    %45 = vector.multi_reduction <add>, %42, %cst_23 [1] : vector<16x32xf32> to vector<16xf32>
    %46 = vector.shape_cast %45 : vector<16xf32> to vector<16x1xf32>
    %cst_24 = arith.constant 3.200000e+01 : f32
    %47 = vector.broadcast %cst_24 : f32 to vector<16x1xf32>
    %48 = arith.divf %46, %47 : vector<16x1xf32>
    %49 = vector.broadcast %48 : vector<16x1xf32> to vector<16x32xf32>
    %50 = arith.subf %42, %49 : vector<16x32xf32>
    %51 = arith.mulf %50, %50 : vector<16x32xf32>
    %cst_25 = arith.constant dense<0.000000e+00> : vector<16xf32>
    %52 = vector.multi_reduction <add>, %51, %cst_25 [1] : vector<16x32xf32> to vector<16xf32>
    %53 = vector.shape_cast %52 : vector<16xf32> to vector<16x1xf32>
    %cst_26 = arith.constant 3.200000e+01 : f32
    %54 = vector.broadcast %cst_26 : f32 to vector<16x1xf32>
    %55 = arith.divf %53, %54 : vector<16x1xf32>
    %cst_27 = arith.constant 9.99999974E-6 : f32
    %56 = vector.broadcast %cst_27 : f32 to vector<16x1xf32>
    %57 = arith.addf %55, %56 : vector<16x1xf32>
    %58 = math.rsqrt %57 : vector<16x1xf32>
    %59 = vector.broadcast %58 : vector<16x1xf32> to vector<16x32xf32>
    %60 = arith.mulf %50, %59 : vector<16x32xf32>
    %61 = vector.broadcast %43 : vector<1x32xf32> to vector<16x32xf32>
    %62 = arith.mulf %60, %61 : vector<16x32xf32>
    %63 = vector.broadcast %44 : vector<1x32xf32> to vector<16x32xf32>
    %64 = arith.addf %62, %63 : vector<16x32xf32>
    %65 = arith.truncf %64 : vector<16x32xf32> to vector<16x32xbf16>
    %c0_28 = arith.constant 0 : index
    %c0_29 = arith.constant 0 : index
    %66 = vector.load %arg9[%c0_28, %c0_29] : memref<32x64xbf16, #tpu.memory_space<vmem>>, vector<32x64xbf16>
    %cst_30 = arith.constant dense<0.000000e+00> : vector<16x64xf32>
    %67 = tpu.matmul %65, %66, %cst_30 {dimension_numbers = #tpu.dot_dimension_numbers<[1], [0], [0], [1], [0, 0, 1, 1], [], []>} : vector<16x32xbf16>, vector<32x64xbf16>, vector<16x64xf32> -> vector<16x64xf32>
    %c0_31 = arith.constant 0 : index
    %c0_32 = arith.constant 0 : index
    %68 = vector.load %arg10[%c0_31, %c0_32] : memref<1x64xf32, #tpu.memory_space<vmem>>, vector<1x64xf32>
    %69 = vector.broadcast %68 : vector<1x64xf32> to vector<16x64xf32>
    %70 = arith.addf %67, %69 : vector<16x64xf32>
    %cst_33 = arith.constant 0.000000e+00 : f32
    %71 = vector.broadcast %cst_33 : f32 to vector<16x64xf32>
    %72 = arith.maximumf %70, %71 : vector<16x64xf32>
    %73 = arith.truncf %72 : vector<16x64xf32> to vector<16x64xbf16>
    %c0_34 = arith.constant 0 : index
    %c0_35 = arith.constant 0 : index
    %74 = vector.load %arg11[%c0_34, %c0_35] : memref<64x32xbf16, #tpu.memory_space<vmem>>, vector<64x32xbf16>
    %cst_36 = arith.constant dense<0.000000e+00> : vector<16x32xf32>
    %75 = tpu.matmul %73, %74, %cst_36 {dimension_numbers = #tpu.dot_dimension_numbers<[1], [0], [0], [1], [0, 0, 1, 1], [], []>} : vector<16x64xbf16>, vector<64x32xbf16>, vector<16x32xf32> -> vector<16x32xf32>
    %c0_37 = arith.constant 0 : index
    %c0_38 = arith.constant 0 : index
    %76 = vector.load %arg12[%c0_37, %c0_38] : memref<1x32xf32, #tpu.memory_space<vmem>>, vector<1x32xf32>
    %77 = vector.broadcast %76 : vector<1x32xf32> to vector<16x32xf32>
    %78 = arith.addf %75, %77 : vector<16x32xf32>
    %79 = arith.addf %64, %78 : vector<16x32xf32>
    %c0_39 = arith.constant 0 : index
    %c0_40 = arith.constant 0 : index
    %80 = vector.load %arg13[%c0_39, %c0_40] : memref<1x32xf32, #tpu.memory_space<vmem>>, vector<1x32xf32>
    %c0_41 = arith.constant 0 : index
    %c0_42 = arith.constant 0 : index
    %81 = vector.load %arg14[%c0_41, %c0_42] : memref<1x32xf32, #tpu.memory_space<vmem>>, vector<1x32xf32>
    %cst_43 = arith.constant dense<0.000000e+00> : vector<16xf32>
    %82 = vector.multi_reduction <add>, %79, %cst_43 [1] : vector<16x32xf32> to vector<16xf32>
    %83 = vector.shape_cast %82 : vector<16xf32> to vector<16x1xf32>
    %cst_44 = arith.constant 3.200000e+01 : f32
    %84 = vector.broadcast %cst_44 : f32 to vector<16x1xf32>
    %85 = arith.divf %83, %84 : vector<16x1xf32>
    %86 = vector.broadcast %85 : vector<16x1xf32> to vector<16x32xf32>
    %87 = arith.subf %79, %86 : vector<16x32xf32>
    %88 = arith.mulf %87, %87 : vector<16x32xf32>
    %cst_45 = arith.constant dense<0.000000e+00> : vector<16xf32>
    %89 = vector.multi_reduction <add>, %88, %cst_45 [1] : vector<16x32xf32> to vector<16xf32>
    %90 = vector.shape_cast %89 : vector<16xf32> to vector<16x1xf32>
    %cst_46 = arith.constant 3.200000e+01 : f32
    %91 = vector.broadcast %cst_46 : f32 to vector<16x1xf32>
    %92 = arith.divf %90, %91 : vector<16x1xf32>
    %cst_47 = arith.constant 9.99999974E-6 : f32
    %93 = vector.broadcast %cst_47 : f32 to vector<16x1xf32>
    %94 = arith.addf %92, %93 : vector<16x1xf32>
    %95 = math.rsqrt %94 : vector<16x1xf32>
    %96 = vector.broadcast %95 : vector<16x1xf32> to vector<16x32xf32>
    %97 = arith.mulf %87, %96 : vector<16x32xf32>
    %98 = vector.broadcast %80 : vector<1x32xf32> to vector<16x32xf32>
    %99 = arith.mulf %97, %98 : vector<16x32xf32>
    %100 = vector.broadcast %81 : vector<1x32xf32> to vector<16x32xf32>
    %101 = arith.addf %99, %100 : vector<16x32xf32>
    %102 = arith.truncf %101 : vector<16x32xf32> to vector<16x32xbf16>
    %c0_48 = arith.constant 0 : index
    %c0_49 = arith.constant 0 : index
    %103 = vector.load %arg15[%c0_48, %c0_49] : memref<32x32xbf16, #tpu.memory_space<vmem>>, vector<32x32xbf16>
    %cst_50 = arith.constant dense<0.000000e+00> : vector<16x32xf32>
    %104 = tpu.matmul %102, %103, %cst_50 {dimension_numbers = #tpu.dot_dimension_numbers<[1], [0], [0], [1], [0, 0, 1, 1], [], []>} : vector<16x32xbf16>, vector<32x32xbf16>, vector<16x32xf32> -> vector<16x32xf32>
    %c0_51 = arith.constant 0 : index
    %c0_52 = arith.constant 0 : index
    %105 = vector.load %arg16[%c0_51, %c0_52] : memref<1x32xf32, #tpu.memory_space<vmem>>, vector<1x32xf32>
    %106 = vector.broadcast %105 : vector<1x32xf32> to vector<16x32xf32>
    %107 = arith.addf %104, %106 : vector<16x32xf32>
    %c0_53 = arith.constant 0 : index
    %c0_54 = arith.constant 0 : index
    %108 = vector.load %arg17[%c0_53, %c0_54] : memref<16x32xf32, #tpu.memory_space<vmem>>, vector<16x32xf32>
    tpu.vector_store %arg17[%c0_53, %c0_54], %107 {strides = array<i32>} : memref<16x32xf32, #tpu.memory_space<vmem>>, vector<16x32xf32>,
    return
  }
}

</mosaic_0001>

<llo_original>
// kernel: tpu_custom_call.1
$region0: #{tpu_custom_call.1}
  #allocation0 [shape = 'u32[]', space=smem, size = 0x4, offset = 0x4, fixed_abs, tag = 'smem constant byte address 0x4 - core index']
  #allocation1 [shape = 'u32[72,128]{1,0:T(1,128)}', space=vmem, size = 0x9000, scoped, tag = 'internal scratch']
  %s0 = inlined_call_operand.vmem [shape: f32[16,32], index: 0, kind: input, shape index: {}]
  %s1 = inlined_call_operand.vmem [shape: bf16[32,32], index: 1, kind: input, shape index: {}]
  %s2 = inlined_call_operand.vmem [shape: f32[1,32], index: 2, kind: input, shape index: {}]
  %s3 = inlined_call_operand.vmem [shape: bf16[32,96], index: 3, kind: input, shape index: {}]
  %s4 = inlined_call_operand.vmem [shape: f32[1,96], index: 4, kind: input, shape index: {}]
  %s5 = inlined_call_operand.hbm [shape: bf16[32,32], index: 5, kind: input, shape index: {}]
  %s6 = inlined_call_operand.vmem [shape: f32[1,32], index: 6, kind: input, shape index: {}]
  %s7 = inlined_call_operand.vmem [shape: f32[1,32], index: 7, kind: input, shape index: {}]
  %s8 = inlined_call_operand.vmem [shape: f32[1,32], index: 8, kind: input, shape index: {}]
  %s9 = inlined_call_operand.hbm [shape: bf16[32,64], index: 9, kind: input, shape index: {}]
  %s10 = inlined_call_operand.vmem [shape: f32[1,64], index: 10, kind: input, shape index: {}]
  %s11 = inlined_call_operand.vmem [shape: bf16[64,32], index: 11, kind: input, shape index: {}]
  %s12 = inlined_call_operand.vmem [shape: f32[1,32], index: 12, kind: input, shape index: {}]
  %s13 = inlined_call_operand.vmem [shape: f32[1,32], index: 13, kind: input, shape index: {}]
  %s14 = inlined_call_operand.vmem [shape: f32[1,32], index: 14, kind: input, shape index: {}]
  %s15 = inlined_call_operand.hbm [shape: bf16[32,32], index: 15, kind: input, shape index: {}]
  %s16 = inlined_call_operand.vmem [shape: f32[1,32], index: 16, kind: input, shape index: {}]
  %s17 = inlined_call_operand.hbm [shape: f32[16,32], index: 17, kind: output, shape index: {}]
  %s18 = sld [smem:[#allocation0]]
  $region90: #{tpu_custom_call.1} parent=0
    _
  %s20 = ssub.s32 1, %s18
  %s21 = scalar_select 0, %s20, %s18
  $region1: #{tpu_custom_call.1} parent=0
    #allocation2 [shape = 'u8[8192]{0}', space=vmem, size = 0x2000, scoped, tag = 'input window, operand 5, single buffered']
    #allocation3 [shape = 's32[1]{0}', space=sflag, size = 0x4, scoped, tag = 'scoped memory for tpu_custom_call.1']
    #allocation4 [shape = 's32[1]{0}', space=sflag, size = 0x4, scoped, tag = 'scoped memory for tpu_custom_call.1']
    #allocation5 [shape = 'u8[8192]{0}', space=vmem, size = 0x2000, scoped, tag = 'input window, operand 9, single buffered']
    #allocation6 [shape = 's32[1]{0}', space=sflag, size = 0x4, scoped, tag = 'scoped memory for tpu_custom_call.1']
    #allocation7 [shape = 'u8[8192]{0}', space=vmem, size = 0x2000, scoped, tag = 'input window, operand 15, single buffered']
    #allocation8 [shape = 'u8[8192]{0}', space=vmem, size = 0x2000, scoped, tag = 'output window, operand 0, single buffered']
    %22 = vsyncpa [#allocation3], 0
    %23 = vsyncpa [#allocation6], 0
    %24 = vsyncpa [#allocation4], 0
    // Predicated region
    $region2: #{tpu_custom_call.1} parent=1 // pred_check
      _
    $region3: #{tpu_custom_call.1} parent=1 // pred_check_branch
      %26 = sbr.rel (0) target = $region5
    $region4: #{tpu_custom_call.1} parent=1 // pred_region
      _
    $region5: #{tpu_custom_call.1} parent=1 // pred_fallthru
      _
    // Predicated region
    $region6: #{tpu_custom_call.1} parent=1 // pred_check
      _
    $region7: #{tpu_custom_call.1} parent=1 // pred_check_branch
      %28 = sbr.rel (0) target = $region9
    $region8: #{tpu_custom_call.1} parent=1 // pred_region
      _
    $region9: #{tpu_custom_call.1} parent=1 // pred_fallthru
      _
    // Predicated region
    $region10: #{tpu_custom_call.1} parent=1 // pred_check
      _
    $region11: #{tpu_custom_call.1} parent=1 // pred_check_branch
      %30 = sbr.rel (0) target = $region13
    $region12: #{tpu_custom_call.1} parent=1 // pred_region
      _
    $region13: #{tpu_custom_call.1} parent=1 // pred_fallthru
      _
    // Predicated region
    $region14: #{tpu_custom_call.1} parent=1 // pred_check
      _
    $region15: #{tpu_custom_call.1} parent=1 // pred_check_branch
      %32 = sbr.rel (0) target = $region17
    $region16: #{tpu_custom_call.1} parent=1 // pred_region
      _
    $region17: #{tpu_custom_call.1} parent=1 // pred_fallthru
      _
    // Predicated region
    $region18: #{tpu_custom_call.1} parent=1 // pred_check
      _
    $region19: #{tpu_custom_call.1} parent=1 // pred_check_branch
      %34 = sbr.rel (0) target = $region21
    $region20: #{tpu_custom_call.1} parent=1 // pred_region
      _
    $region21: #{tpu_custom_call.1} parent=1 // pred_fallthru
      _
    // Predicated region
    $region22: #{tpu_custom_call.1} parent=1 // pred_check
      _
    $region23: #{tpu_custom_call.1} parent=1 // pred_check_branch
      %36 = sbr.rel (0) target = $region25
    $region24: #{tpu_custom_call.1} parent=1 // pred_region
      %38 = vsyncadd [#allocation3], 0
      %s39 = sshll.u32 %s5, 4
      %s40 = int_to_ptr.hbm [resolvable:$true] %s39
      %s41 = sshll.u32 [#allocation2], 4
      %s42 = int_to_ptr.vmem [resolvable:$true] %s41
      %47 = dma.hbm_to_vmem [thread:$0]  %s40, 256, %s42, [#allocation3], 64, 64, 4
    $region25: #{tpu_custom_call.1} parent=1 // pred_fallthru
      _
    // Predicated region
    $region26: #{tpu_custom_call.1} parent=1 // pred_check
      _
    $region27: #{tpu_custom_call.1} parent=1 // pred_check_branch
      %49 = sbr.rel (0) target = $region29
    $region28: #{tpu_custom_call.1} parent=1 // pred_region
      _
    $region29: #{tpu_custom_call.1} parent=1 // pred_fallthru
      _
    // Predicated region
    $region30: #{tpu_custom_call.1} parent=1 // pred_check
      _
    $region31: #{tpu_custom_call.1} parent=1 // pred_check_branch
      %51 = sbr.rel (0) target = $region33
    $region32: #{tpu_custom_call.1} parent=1 // pred_region
      _
    $region33: #{tpu_custom_call.1} parent=1 // pred_fallthru
      _
    // Predicated region
    $region34: #{tpu_custom_call.1} parent=1 // pred_check
      _
    $region35: #{tpu_custom_call.1} parent=1 // pred_check_branch
      %53 = sbr.rel (0) target = $region37
    $region36: #{tpu_custom_call.1} parent=1 // pred_region
      _
    $region37: #{tpu_custom_call.1} parent=1 // pred_fallthru
      _
    // Predicated region
    $region38: #{tpu_custom_call.1} parent=1 // pred_check
      _
    $region39: #{tpu_custom_call.1} parent=1 // pred_check_branch
      %55 = sbr.rel (0) target = $region41
    $region40: #{tpu_custom_call.1} parent=1 // pred_region
      %57 = vsyncadd [#allocation6], 0
      %s58 = sshll.u32 %s9, 4
      %s59 = int_to_ptr.hbm [resolvable:$true] %s58
      %s60 = sshll.u32 [#allocation5], 4
      %s61 = int_to_ptr.vmem [resolvable:$true] %s60
      %66 = dma.hbm_to_vmem [thread:$0]  %s59, 256, %s61, [#allocation6], 64, 64, 4
    $region41: #{tpu_custom_call.1} parent=1 // pred_fallthru
      _
    // Predicated region
    $region42: #{tpu_custom_call.1} parent=1 // pred_check
      _
    $region43: #{tpu_custom_call.1} parent=1 // pred_check_branch
      %68 = sbr.rel (0) target = $region45
    $region44: #{tpu_custom_call.1} parent=1 // pred_region
      _
    $region45: #{tpu_custom_call.1} parent=1 // pred_fallthru
      _
    // Predicated region
    $region46: #{tpu_custom_call.1} parent=1 // pred_check
      _
    $region47: #{tpu_custom_call.1} parent=1 // pred_check_branch
      %70 = sbr.rel (0) target = $region49
    $region48: #{tpu_custom_call.1} parent=1 // pred_region
      _
    $region49: #{tpu_custom_call.1} parent=1 // pred_fallthru
      _
    // Predicated region
    $region50: #{tpu_custom_call.1} parent=1 // pred_check
      _
    $region51: #{tpu_custom_call.1} parent=1 // pred_check_branch
      %72 = sbr.rel (0) target = $region53
    $region52: #{tpu_custom_call.1} parent=1 // pred_region
      _
    $region53: #{tpu_custom_call.1} parent=1 // pred_fallthru
      _
    // Predicated region
    $region54: #{tpu_custom_call.1} parent=1 // pred_check
      _
    $region55: #{tpu_custom_call.1} parent=1 // pred_check_branch
      %74 = sbr.rel (0) target = $region57
    $region56: #{tpu_custom_call.1} parent=1 // pred_region
      _
    $region57: #{tpu_custom_call.1} parent=1 // pred_fallthru
      _
    // Predicated region
    $region58: #{tpu_custom_call.1} parent=1 // pred_check
      _
    $region59: #{tpu_custom_call.1} parent=1 // pred_check_branch
      %76 = sbr.rel (0) target = $region61
    $region60: #{tpu_custom_call.1} parent=1 // pred_region
      _
    $region61: #{tpu_custom_call.1} parent=1 // pred_fallthru
      _
    // Predicated region
    $region62: #{tpu_custom_call.1} parent=1 // pred_check
      _
    $region63: #{tpu_custom_call.1} parent=1 // pred_check_branch
      %78 = sbr.rel (0) target = $region65
    $region64: #{tpu_custom_call.1} parent=1 // pred_region
      %80 = vsyncadd [#allocation6], 0
      %s81 = sshll.u32 %s15, 4
      %s82 = int_to_ptr.hbm [resolvable:$true] %s81
      %s83 = sshll.u32 [#allocation7], 4
      %s84 = int_to_ptr.vmem [resolvable:$true] %s83
      %89 = dma.hbm_to_vmem [thread:$0]  %s82, 256, %s84, [#allocation6], 64, 64, 4
    $region65: #{tpu_custom_call.1} parent=1 // pred_fallthru
      _
    // Predicated region
    $region66: #{tpu_custom_call.1} parent=1 // pred_check
      _
    $region67: #{tpu_custom_call.1} parent=1 // pred_check_branch
      %91 = sbr.rel (0) target = $region69
    $region68: #{tpu_custom_call.1} parent=1 // pred_region
      _
    $region69: #{tpu_custom_call.1} parent=1 // pred_fallthru
      _
    // Predicated region
    $region70: #{tpu_custom_call.1} parent=1 // pred_check
      _
    $region71: #{tpu_custom_call.1} parent=1 // pred_check_branch
      %93 = sbr.rel (0) target = $region73
    $region72: #{tpu_custom_call.1} parent=1 // pred_region
      %95 = dma.done [#allocation3], 256
    $region73: #{tpu_custom_call.1} parent=1 // pred_fallthru
      _
    // Predicated region
    $region74: #{tpu_custom_call.1} parent=1 // pred_check
      _
    $region75: #{tpu_custom_call.1} parent=1 // pred_check_branch
      %97 = sbr.rel (0) target = $region77
    $region76: #{tpu_custom_call.1} parent=1 // pred_region
      %99 = dma.done [#allocation6], 256
    $region77: #{tpu_custom_call.1} parent=1 // pred_fallthru
      _
    // Predicated region
    $region78: #{tpu_custom_call.1} parent=1 // pred_check
      _
    $region79: #{tpu_custom_call.1} parent=1 // pred_check_branch
      %101 = sbr.rel (0) target = $region81
    $region80: #{tpu_custom_call.1} parent=1 // pred_region
      %103 = dma.done [#allocation6], 256
    $region81: #{tpu_custom_call.1} parent=1 // pred_fallthru
      _
    %v105 = vld [vmem:[%s0] sm:$0xff]
    %v106 = vld [vmem:[%s0 + $0x8] sm:$0xff]
    %v107 = vpack.c.bf16 %v106, %v105
    %v108 = vld [vmem:[%s1] sm:$0xf]
    %v109 = vld [vmem:[%s1 + $0x4] sm:$0xf]
    %v110 = vld [vmem:[%s1 + $0x8] sm:$0xf]
    %v111 = vld [vmem:[%s1 + $0xc] sm:$0xf]
    %v112 = vld [vmem:[%s2] sm:$0x1]
    %v114 = vperm.slane %v112, 0
    %v120 = vunpack.c.l.b16 %v108
    %v121 = vunpack.c.l.b16 %v109
    %v122 = vunpack.c.l.b16 %v110
    %v123 = vunpack.c.l.b16 %v111
    %v124 = vpack.c.b16 %v121, %v120
    %v125 = vpack.c.b16 %v123, %v122
    %vm128 = vcmask 261120
    %v130 = vsel %vm128, %v107, 0
    %132 = vmatpush.bf16.msra.mxu0 0
    %133 = vmatpush.bf16.msra.mxu0 0
    %134 = vmatpush.bf16.msra.mxu0 0
    %135 = vmatpush.bf16.msra.mxu0 0
    %136 = vmatpush.bf16.msra.mxu0 0
    %137 = vmatpush.bf16.msra.mxu0 0
    %138 = vmatpush.bf16.msra.mxu0 %v125
    %139 = vmatpush.bf16.msra.mxu0 %v124
    %140 = vmatmul.bf16.gmra.mxu0 %v130
    %v141 = vpop.f32.mrf.mxu0
    %v142 = vadd.f32 %v114, %v141
    %v143 = vpop.f32.mrf.mxu0
    %v144 = vadd.f32 %v114, %v143
    %145 = vdwg.mxu0
    %v146 = vpack.c.bf16 %v144, %v142
    %v147 = vld [vmem:[%s3] sm:$0xf]
    %v148 = vld [vmem:[%s3 + $0x4] sm:$0xf]
    %v149 = vld [vmem:[%s3 + $0x8] sm:$0xf]
    %v150 = vld [vmem:[%s3 + $0xc] sm:$0xf]
    %v151 = vld [vmem:[%s4] sm:$0x1]
    %v153 = vperm.slane %v151, 0
    %v159 = vunpack.c.l.b16 %v147
    %v160 = vunpack.c.l.b16 %v148
    %v161 = vunpack.c.l.b16 %v149
    %v162 = vunpack.c.l.b16 %v150
    %v163 = vpack.c.b16 %v160, %v159
    %v164 = vpack.c.b16 %v162, %v161
    %v168 = vsel %vm128, %v146, 0
    %170 = vmatpush.bf16.msra.mxu0 0
    %171 = vmatpush.bf16.msra.mxu0 0
    %172 = vmatpush.bf16.msra.mxu0 0
    %173 = vmatpush.bf16.msra.mxu0 0
    %174 = vmatpush.bf16.msra.mxu0 0
    %175 = vmatpush.bf16.msra.mxu0 0
    %176 = vmatpush.bf16.msra.mxu0 %v164
    %177 = vmatpush.bf16.msra.mxu0 %v163
    %178 = vmatmul.bf16.gmra.mxu0 %v168
    %v179 = vpop.f32.mrf.mxu0
    %v180 = vadd.f32 %v153, %v179
    %v181 = vpop.f32.mrf.mxu0
    %v182 = vadd.f32 %v153, %v181
    %183 = vdwg.mxu0
    %v184 = vpack.c.bf16 %v180, %v180
    %v185 = vpack.c.bf16 %v182, %v182
    %v187 = vunpack.c.l.b16 %v184
    %v188 = vpack.c.b16 %v187, %v187
    %189 = vrot.lane.b32.xlu0 %v188, 96
    %v190 = vpop.permute.xlu0 %189
    %v192 = vsel %vm128, %v184, 0
    %v195 = vsel %vm128, %v190, 0
    %197 = vmatpush.bf16.xpose.msra.mxu0 0
    %198 = vmatpush.bf16.xpose.msra.mxu0 0
    %199 = vmatpush.bf16.xpose.msra.mxu0 0
    %200 = vmatpush.bf16.xpose.msra.mxu0 0
    %201 = vmatpush.bf16.xpose.msra.mxu0 0
    %202 = vmatpush.bf16.xpose.msra.mxu0 0
    %203 = vmatpush.bf16.xpose.msra.mxu0 0
    %204 = vmatpush.bf16.xpose.msra.mxu0 %v195
    %205 = vmatmul.bf16.gmra.mxu0 %v192
    %v206 = vpop.f32.mrf.mxu0
    %v207 = vadd.f32 0.0, %v206
    %v208 = vpop.f32.mrf.mxu0
    %209 = vdwg.mxu0
    %v211 = vunpack.c.l.b16 %v185
    %v212 = vpack.c.b16 %v211, %v211
    %213 = vrot.lane.b32.xlu0 %v212, 96
    %v214 = vpop.permute.xlu0 %213
    %v216 = vsel %vm128, %v185, 0
    %v219 = vsel %vm128, %v214, 0
    %221 = vmatpush.bf16.xpose.msra.mxu0 0
    %222 = vmatpush.bf16.xpose.msra.mxu0 0
    %223 = vmatpush.bf16.xpose.msra.mxu0 0
    %224 = vmatpush.bf16.xpose.msra.mxu0 0
    %225 = vmatpush.bf16.xpose.msra.mxu0 0
    %226 = vmatpush.bf16.xpose.msra.mxu0 0
    %227 = vmatpush.bf16.xpose.msra.mxu0 0
    %228 = vmatpush.bf16.xpose.msra.mxu0 %v219
    %229 = vmatmul.bf16.gmra.mxu0 %v216
    %v230 = vpop.f32.mrf.mxu0
    %v231 = vadd.f32 0.0, %v230
    %v232 = vpop.f32.mrf.mxu0
    %233 = vdwg.mxu0
    %vm234 = vcmask 64512
    %v235 = vsel %vm234, %v207, -inf
    %236 = vmax.xlane.f32.xlu0 %v235
    %v237 = vpop.xlane.xlu0 %236
    %v238 = vsel %vm234, %v231, -inf
    %239 = vmax.xlane.f32.xlu0 %v238
    %v240 = vpop.xlane.xlu0 %239
    %v241 = vsub.f32 %v207, %v237
    %v242 = vsub.f32 %v231, %v240
    %v243 = vmul.f32 %v241, 1.442695
    %v244 = vpow.pop %v243
    %v245 = vmul.f32 %v242, 1.442695
    %v246 = vpow.pop %v245
    %v247 = vsel %vm234, %v244, 0.0
    %248 = vadd.xlane.f32.xlu0 %v247
    %v249 = vpop.xlane.xlu0 %248
    %v250 = vsel %vm234, %v246, 0.0
    %251 = vadd.xlane.f32.xlu0 %v250
    %v252 = vpop.xlane.xlu0 %251
    %v253 = vrcp.pop %v249
    %v254 = vrcp.pop %v252
    %v255 = vmul.f32 %v244, %v253
    %v256 = vmul.f32 %v246, %v254
    %v257 = vpack.c.bf16 %v255, %v255
    %v258 = vpack.c.bf16 %v256, %v256
    %259 = vrot.lane.b32.xlu0 %v188, 64
    %v260 = vpop.permute.xlu0 %259
    %v262 = vsel %vm234, %v257, 0
    %vm264 = vcmask 1043456
    %v266 = vsel %vm264, %v260, 0
    %268 = vmatpush.bf16.msra.mxu0 0
    %269 = vmatpush.bf16.msra.mxu0 0
    %270 = vmatpush.bf16.msra.mxu0 0
    %271 = vmatpush.bf16.msra.mxu0 0
    %272 = vmatpush.bf16.msra.mxu0 0
    %273 = vmatpush.bf16.msra.mxu0 0
    %274 = vmatpush.bf16.msra.mxu0 0
    %275 = vmatpush.bf16.msra.mxu0 %v266
    %276 = vmatmul.bf16.gmra.mxu0 %v262
    %v277 = vpop.f32.mrf.mxu0
    %v278 = vadd.f32 0.0, %v277
    %v279 = vpop.f32.mrf.mxu0
    %280 = vdwg.mxu0
    %281 = vrot.lane.b32.xlu0 %v212, 64
    %v282 = vpop.permute.xlu0 %281
    %v284 = vsel %vm234, %v258, 0
    %v287 = vsel %vm264, %v282, 0
    %289 = vmatpush.bf16.msra.mxu0 0
    %290 = vmatpush.bf16.msra.mxu0 0
    %291 = vmatpush.bf16.msra.mxu0 0
    %292 = vmatpush.bf16.msra.mxu0 0
    %293 = vmatpush.bf16.msra.mxu0 0
    %294 = vmatpush.bf16.msra.mxu0 0
    %295 = vmatpush.bf16.msra.mxu0 0
    %296 = vmatpush.bf16.msra.mxu0 %v287
    %297 = vmatmul.bf16.gmra.mxu0 %v284
    %v298 = vpop.f32.mrf.mxu0
    %v299 = vadd.f32 0.0, %v298
    %v300 = vpop.f32.mrf.mxu0
    %301 = vdwg.mxu0
    %v302 = vpack.c.bf16 %v299, %v278
    %v303 = vld [vmem:[#allocation2] sm:$0xf]
    %v304 = vld [vmem:[#allocation2 + $0x4] sm:$0xf]
    %v305 = vld [vmem:[#allocation2 + $0x8] sm:$0xf]
    %v306 = vld [vmem:[#allocation2 + $0xc] sm:$0xf]
    %v307 = vld [vmem:[%s6] sm:$0x1]
    %v309 = vperm.slane %v307, 0
    %v315 = vunpack.c.l.b16 %v303
    %v316 = vunpack.c.l.b16 %v304
    %v317 = vunpack.c.l.b16 %v305
    %v318 = vunpack.c.l.b16 %v306
    %v319 = vpack.c.b16 %v316, %v315
    %v320 = vpack.c.b16 %v318, %v317
    %v324 = vsel %vm128, %v302, 0
    %326 = vmatpush.bf16.msra.mxu0 0
    %327 = vmatpush.bf16.msra.mxu0 0
    %328 = vmatpush.bf16.msra.mxu0 0
    %329 = vmatpush.bf16.msra.mxu0 0
    %330 = vmatpush.bf16.msra.mxu0 0
    %331 = vmatpush.bf16.msra.mxu0 0
    %332 = vmatpush.bf16.msra.mxu0 %v320
    %333 = vmatpush.bf16.msra.mxu0 %v319
    %334 = vmatmul.bf16.gmra.mxu0 %v324
    %v335 = vpop.f32.mrf.mxu0
    %v336 = vadd.f32 %v309, %v335
    %v337 = vpop.f32.mrf.mxu0
    %v338 = vadd.f32 %v309, %v337
    %339 = vdwg.mxu0
    %v340 = vadd.f32 %v142, %v336
    %v341 = vadd.f32 %v144, %v338
    %v342 = vld [vmem:[%s7] sm:$0x1]
    %v343 = vld [vmem:[%s8] sm:$0x1]
    %v344 = vsel %vm128, %v340, 0.0
    %345 = vadd.xlane.f32.xlu0 %v344
    %v346 = vpop.xlane.xlu0 %345
    %v347 = vsel %vm128, %v341, 0.0
    %348 = vadd.xlane.f32.xlu0 %v347
    %v349 = vpop.xlane.xlu0 %348
    %v350 = vrcp.pop 32.0
    %v351 = vmul.f32 32.0, %v350
    %v352 = vsub.f32 1.0, %v351
    %v353 = vmul.f32 %v350, %v352
    %v354 = vadd.f32 %v350, %v353
    %vm355 = vweird.f32 %v350
    %v356 = vsel %vm355, %v350, %v354
    %v357 = vmul.f32 %v346, %v356
    %v358 = vmul.f32 %v349, %v356
    %v359 = vsub.f32 %v340, %v357
    %v360 = vsub.f32 %v341, %v358
    %v361 = vmul.f32 %v359, %v359
    %v362 = vmul.f32 %v360, %v360
    %v363 = vsel %vm128, %v361, 0.0
    %364 = vadd.xlane.f32.xlu0 %v363
    %v365 = vpop.xlane.xlu0 %364
    %v366 = vsel %vm128, %v362, 0.0
    %367 = vadd.xlane.f32.xlu0 %v366
    %v368 = vpop.xlane.xlu0 %367
    %v369 = vmul.f32 %v365, %v356
    %v370 = vmul.f32 %v368, %v356
    %v371 = vadd.f32 %v369, 1e-05
    %v372 = vadd.f32 %v370, 1e-05
    %v373 = vrsqrt.pop %v371
    %v374 = vmul.f32 %v373, %v371
    %v375 = vmul.f32 %v374, %v373
    %v376 = vmul.f32 0.5, %v375
    %v377 = vsub.f32 1.5, %v376
    %v378 = vmul.f32 %v373, %v377
    %vm379 = vweird.f32 %v371
    %vm380 = vweird.f32 %v373
    %vm381 = vmor %vm379, %vm380
    %v382 = vsel %vm381, %v373, %v378
    %v383 = vrsqrt.pop %v372
    %v384 = vmul.f32 %v383, %v372
    %v385 = vmul.f32 %v384, %v383
    %v386 = vmul.f32 0.5, %v385
    %v387 = vsub.f32 1.5, %v386
    %v388 = vmul.f32 %v383, %v387
    %vm389 = vweird.f32 %v372
    %vm390 = vweird.f32 %v383
    %vm391 = vmor %vm389, %vm390
    %v392 = vsel %vm391, %v383, %v388
    %v393 = vmul.f32 %v359, %v382
    %v394 = vmul.f32 %v360, %v392
    %v396 = vperm.slane %v342, 0
    %v398 = vmul.f32 %v393, %v396
    %v399 = vmul.f32 %v394, %v396
    %v401 = vperm.slane %v343, 0
    %v403 = vadd.f32 %v398, %v401
    %v404 = vadd.f32 %v399, %v401
    %v405 = vpack.c.bf16 %v404, %v403
    %v406 = vld [vmem:[#allocation5] sm:$0xf]
    %v407 = vld [vmem:[#allocation5 + $0x4] sm:$0xf]
    %v408 = vld [vmem:[#allocation5 + $0x8] sm:$0xf]
    %v409 = vld [vmem:[#allocation5 + $0xc] sm:$0xf]
    %v410 = vld [vmem:[%s10] sm:$0x1]
    %v412 = vperm.slane %v410, 0
    %v418 = vunpack.c.l.b16 %v406
    %v419 = vunpack.c.l.b16 %v407
    %v420 = vunpack.c.l.b16 %v408
    %v421 = vunpack.c.l.b16 %v409
    %v422 = vpack.c.b16 %v419, %v418
    %v423 = vpack.c.b16 %v421, %v420
    %v427 = vsel %vm128, %v405, 0
    %429 = vmatpush.bf16.msra.mxu0 0
    %430 = vmatpush.bf16.msra.mxu0 0
    %431 = vmatpush.bf16.msra.mxu0 0
    %432 = vmatpush.bf16.msra.mxu0 0
    %433 = vmatpush.bf16.msra.mxu0 0
    %434 = vmatpush.bf16.msra.mxu0 0
    %435 = vmatpush.bf16.msra.mxu0 %v423
    %436 = vmatpush.bf16.msra.mxu0 %v422
    %437 = vmatmul.bf16.gmra.mxu0 %v427
    %v438 = vpop.f32.mrf.mxu0
    %v439 = vadd.f32 %v412, %v438
    %v440 = vpop.f32.mrf.mxu0
    %v441 = vadd.f32 %v412, %v440
    %442 = vdwg.mxu0
    %v443 = vmax.f32 %v439, 0.0
    %v444 = vmax.f32 %v441, 0.0
    %v445 = vpack.c.bf16 %v444, %v443
    %v446 = vld [vmem:[%s11] sm:$0xf]
    %v447 = vld [vmem:[%s11 + $0x4] sm:$0xf]
    %v448 = vld [vmem:[%s11 + $0x8] sm:$0xf]
    %v449 = vld [vmem:[%s11 + $0xc] sm:$0xf]
    %v450 = vld [vmem:[%s11 + $0x10] sm:$0xf]
    %v451 = vld [vmem:[%s11 + $0x14] sm:$0xf]
    %v452 = vld [vmem:[%s11 + $0x18] sm:$0xf]
    %v453 = vld [vmem:[%s11 + $0x1c] sm:$0xf]
    %v454 = vld [vmem:[%s12] sm:$0x1]
    %v456 = vperm.slane %v454, 0
    %v466 = vunpack.c.l.b16 %v446
    %v467 = vunpack.c.l.b16 %v447
    %v468 = vunpack.c.l.b16 %v448
    %v469 = vunpack.c.l.b16 %v449
    %v470 = vunpack.c.l.b16 %v450
    %v471 = vunpack.c.l.b16 %v451
    %v472 = vunpack.c.l.b16 %v452
    %v473 = vunpack.c.l.b16 %v453
    %v474 = vpack.c.b16 %v467, %v466
    %v475 = vpack.c.b16 %v469, %v468
    %v476 = vpack.c.b16 %v471, %v470
    %v477 = vpack.c.b16 %v473, %v472
    %vm482 = vcmask 523264
    %v484 = vsel %vm482, %v445, 0
    %486 = vmatpush.bf16.msra.mxu0 0
    %487 = vmatpush.bf16.msra.mxu0 0
    %488 = vmatpush.bf16.msra.mxu0 0
    %489 = vmatpush.bf16.msra.mxu0 0
    %490 = vmatpush.bf16.msra.mxu0 %v477
    %491 = vmatpush.bf16.msra.mxu0 %v476
    %492 = vmatpush.bf16.msra.mxu0 %v475
    %493 = vmatpush.bf16.msra.mxu0 %v474
    %494 = vmatmul.bf16.gmra.mxu0 %v484
    %v495 = vpop.f32.mrf.mxu0
    %v496 = vadd.f32 %v456, %v495
    %v497 = vpop.f32.mrf.mxu0
    %v498 = vadd.f32 %v456, %v497
    %499 = vdwg.mxu0
    %v500 = vadd.f32 %v403, %v496
    %v501 = vadd.f32 %v404, %v498
    %v502 = vld [vmem:[%s13] sm:$0x1]
    %v503 = vld [vmem:[%s14] sm:$0x1]
    %v504 = vsel %vm128, %v500, 0.0
    %505 = vadd.xlane.f32.xlu0 %v504
    %v506 = vpop.xlane.xlu0 %505
    %v507 = vsel %vm128, %v501, 0.0
    %508 = vadd.xlane.f32.xlu0 %v507
    %v509 = vpop.xlane.xlu0 %508
    %v510 = vmul.f32 %v506, %v356
    %v511 = vmul.f32 %v509, %v356
    %v512 = vsub.f32 %v500, %v510
    %v513 = vsub.f32 %v501, %v511
    %v514 = vmul.f32 %v512, %v512
    %v515 = vmul.f32 %v513, %v513
    %v516 = vsel %vm128, %v514, 0.0
    %517 = vadd.xlane.f32.xlu0 %v516
    %v518 = vpop.xlane.xlu0 %517
    %v519 = vsel %vm128, %v515, 0.0
    %520 = vadd.xlane.f32.xlu0 %v519
    %v521 = vpop.xlane.xlu0 %520
    %v522 = vmul.f32 %v518, %v356
    %v523 = vmul.f32 %v521, %v356
    %v524 = vadd.f32 %v522, 1e-05
    %v525 = vadd.f32 %v523, 1e-05
    %v526 = vrsqrt.pop %v524
    %v527 = vmul.f32 %v526, %v524
    %v528 = vmul.f32 %v527, %v526
    %v529 = vmul.f32 0.5, %v528
    %v530 = vsub.f32 1.5, %v529
    %v531 = vmul.f32 %v526, %v530
    %vm532 = vweird.f32 %v524
    %vm533 = vweird.f32 %v526
    %vm534 = vmor %vm532, %vm533
    %v535 = vsel %vm534, %v526, %v531
    %v536 = vrsqrt.pop %v525
    %v537 = vmul.f32 %v536, %v525
    %v538 = vmul.f32 %v537, %v536
    %v539 = vmul.f32 0.5, %v538
    %v540 = vsub.f32 1.5, %v539
    %v541 = vmul.f32 %v536, %v540
    %vm542 = vweird.f32 %v525
    %vm543 = vweird.f32 %v536
    %vm544 = vmor %vm542, %vm543
    %v545 = vsel %vm544, %v536, %v541
    %v546 = vmul.f32 %v512, %v535
    %v547 = vmul.f32 %v513, %v545
    %v549 = vperm.slane %v502, 0
    %v551 = vmul.f32 %v546, %v549
    %v552 = vmul.f32 %v547, %v549
    %v554 = vperm.slane %v503, 0
    %v556 = vadd.f32 %v551, %v554
    %v557 = vadd.f32 %v552, %v554
    %v558 = vpack.c.bf16 %v557, %v556
    %v559 = vld [vmem:[#allocation7] sm:$0xf]
    %v560 = vld [vmem:[#allocation7 + $0x4] sm:$0xf]
    %v561 = vld [vmem:[#allocation7 + $0x8] sm:$0xf]
    %v562 = vld [vmem:[#allocation7 + $0xc] sm:$0xf]
    %v563 = vld [vmem:[%s16] sm:$0x1]
    %v565 = vperm.slane %v563, 0
    %v571 = vunpack.c.l.b16 %v559
    %v572 = vunpack.c.l.b16 %v560
    %v573 = vunpack.c.l.b16 %v561
    %v574 = vunpack.c.l.b16 %v562
    %v575 = vpack.c.b16 %v572, %v571
    %v576 = vpack.c.b16 %v574, %v573
    %v580 = vsel %vm128, %v558, 0
    %582 = vmatpush.bf16.msra.mxu0 0
    %583 = vmatpush.bf16.msra.mxu0 0
    %584 = vmatpush.bf16.msra.mxu0 0
    %585 = vmatpush.bf16.msra.mxu0 0
    %586 = vmatpush.bf16.msra.mxu0 0
    %587 = vmatpush.bf16.msra.mxu0 0
    %588 = vmatpush.bf16.msra.mxu0 %v576
    %589 = vmatpush.bf16.msra.mxu0 %v575
    %590 = vmatmul.bf16.gmra.mxu0 %v580
    %v591 = vpop.f32.mrf.mxu0
    %v592 = vadd.f32 %v565, %v591
    %v593 = vpop.f32.mrf.mxu0
    %v594 = vadd.f32 %v565, %v593
    %595 = vdwg.mxu0
    %596 = vst.msk [vmem:[#allocation8] sm:$0xff] %vm128, %v592
    %597 = vst.msk [vmem:[#allocation8 + $0x8] sm:$0xff] %vm128, %v594
    // Predicated region
    $region82: #{tpu_custom_call.1} parent=1 // pred_check
      _
    $region83: #{tpu_custom_call.1} parent=1 // pred_check_branch
      %599 = sbr.rel (0) target = $region85
    $region84: #{tpu_custom_call.1} parent=1 // pred_region
      %601 = vsyncadd [#allocation4], 0
      %s602 = sshll.u32 [#allocation8], 4
      %s603 = int_to_ptr.vmem [resolvable:$true] %s602
      %s604 = sshll.u32 %s17, 4
      %s605 = int_to_ptr.hbm [resolvable:$true] %s604
      %610 = dma.vmem_to_hbm [thread:$0]  %s603, 256, %s605, [#allocation4], 128, 128, 8
    $region85: #{tpu_custom_call.1} parent=1 // pred_fallthru
      _
    // Predicated region
    $region86: #{tpu_custom_call.1} parent=1 // pred_check
      _
    $region87: #{tpu_custom_call.1} parent=1 // pred_check_branch
      %612 = sbr.rel (0) target = $region89
    $region88: #{tpu_custom_call.1} parent=1 // pred_region
      %614 = dma.done [#allocation4], 256
    $region89: #{tpu_custom_call.1} parent=1 // pred_fallthru
      _
    %615 = vsyncpa [#allocation3], 1
    %616 = vsyncpa [#allocation6], 1
    %617 = vsyncpa [#allocation4], 1

</llo_original>
